<compile_context>
chip_gen: v5e
topology: v5e:2x2
jax: 0.10.0
libtpu: 0.0.40
codegen_flags: <defaults>
</compile_context>

<pallas_src>
import jax
import jax.numpy as jnp
from jax.experimental import pallas as pl
from jax.experimental.pallas import tpu as pltpu


def _identity_kernel(x_ref, o_ref):
    # straight VMEM copy of the current tile
    o_ref[...] = x_ref[...]


# ~2 MiB per tile: with input+output each double-buffered this is ~8 MiB of
# resident VMEM, safely inside the 32 MiB scoped default on every generation
# (and well inside v7x's 64 MiB physical VMEM).
_TARGET_TILE_BYTES = 2 * 1024 * 1024


def _choose_lanes(total, last_dim):
    """Largest multiple-of-128 lane width that divides the element count."""
    for lanes in (2048, 1024, 512, 256, 128):
        if total % lanes == 0:
            return lanes
    # Fallback: keep the original last dim (full-extent block, so the
    # (8,128) divisibility requirement does not apply).
    return max(1, last_dim)


def _sublane_granularity(itemsize):
    # f32 -> 8, bf16 -> 16, int8 -> 32 (sub-32-bit dtypes pack along sublanes)
    return max(8, 32 // max(1, itemsize))


def _choose_row_tile(rows, lanes, itemsize):
    """Largest sublane-aligned exact divisor of `rows` under the tile budget."""
    sub = _sublane_granularity(itemsize)
    max_rows = max(sub, _TARGET_TILE_BYTES // (lanes * itemsize))
    if rows <= max_rows:
        return rows  # single full-extent block, no grid padding needed
    start = (max_rows // sub) * sub
    for cand in range(start, 0, -sub):
        if rows % cand == 0:
            return cand
    return None  # no clean divisor -> caller uses the (rare) pad fallback


def attention_identity(x):
    """Pallas implementation of Attention(name=None).forward == nn.Identity."""
    if x.size == 0:
        return x

    orig_shape = x.shape
    total = int(x.size)
    itemsize = jnp.dtype(x.dtype).itemsize
    last_dim = orig_shape[-1] if x.ndim >= 1 else 1

    lanes = _choose_lanes(total, last_dim)
    rows = total // lanes
    x2 = x.reshape(rows, lanes)

    row_tile = _choose_row_tile(rows, lanes, itemsize)

    pad_rows = 0
    if row_tile is None:
        # Rare ragged case: rows has no sublane-aligned divisor under the
        # budget.  Pad to one tile multiple (extra HBM pass, but correct).
        sub = _sublane_granularity(itemsize)
        max_rows = max(sub, _TARGET_TILE_BYTES // (lanes * itemsize))
        row_tile = max(sub, (max_rows // sub) * sub)
        pad_rows = (-rows) % row_tile
        x2 = jnp.pad(x2, ((0, pad_rows), (0, 0)))

    padded_rows = rows + pad_rows
    grid = (padded_rows // row_tile,)

    out2 = pl.pallas_call(
        _identity_kernel,
        out_shape=jax.ShapeDtypeStruct((padded_rows, lanes), x.dtype),
        grid_spec=pltpu.PrefetchScalarGridSpec(
            num_scalar_prefetch=0,
            grid=grid,
            in_specs=[pl.BlockSpec((row_tile, lanes), lambda i: (i, 0))],
            out_specs=pl.BlockSpec((row_tile, lanes), lambda i: (i, 0)),
        ),
        compiler_params=pltpu.CompilerParams(
            dimension_semantics=("parallel",),
        ),
        input_output_aliases={0: 0},
    )(x2)

    if pad_rows:
        out2 = out2[:rows]
    return out2.reshape(orig_shape)


if __name__ == "__main__":
    key = jax.random.PRNGKey(0)

    # NCHW input consistent with an attention-on-feature-maps module:
    # batch=2, channels=4, spatial=16x16 -> 2048 elems -> single (2, 1024) block.
    x = jax.random.normal(key, (2, 4, 16, 16), dtype=jnp.float32)
    y = jax.block_until_ready(attention_identity(x))
    assert y.shape == x.shape and y.dtype == x.dtype
    assert bool(jnp.allclose(y, x)), "identity kernel mismatch (lane-dense path)"

    # Ragged shape exercising the non-128-divisible fallback (full-extent block).
    x2 = jax.random.normal(jax.random.PRNGKey(1), (2, 3, 5, 7), dtype=jnp.float32)
    y2 = jax.block_until_ready(attention_identity(x2))
    assert y2.shape == x2.shape and y2.dtype == x2.dtype
    assert bool(jnp.allclose(y2, x2)), "identity kernel mismatch (fallback path)"

    print("KERNEL_OK")
</pallas_src>

<mosaic_0001>
module attributes {stable_mosaic.version = 11 : i64} {
  func.func @_identity_kernel(%arg0: i32, %arg1: memref<1x2048xf32, #tpu.memory_space<vmem>>, %arg2: memref<1x2048xf32, #tpu.memory_space<vmem>>) attributes {dimension_semantics = [#tpu.dimension_semantics<parallel>], iteration_bounds = array<i64: 1>, scalar_prefetch = 0 : i64, scratch_operands = 0 : i64, tpu.core_type = #tpu.core_type<tc>, window_params = [{transform_indices = @transform_0, window_bounds = array<i64: 1, 2048>}, {transform_indices = @transform_1, window_bounds = array<i64: 1, 2048>}]} {
    %c0 = arith.constant 0 : index
    %c0_0 = arith.constant 0 : index
    %0 = vector.load %arg1[%c0, %c0_0] : memref<1x2048xf32, #tpu.memory_space<vmem>>, vector<1x2048xf32>
    %c0_1 = arith.constant 0 : index
    %c0_2 = arith.constant 0 : index
    %1 = vector.load %arg2[%c0_1, %c0_2] : memref<1x2048xf32, #tpu.memory_space<vmem>>, vector<1x2048xf32>
    tpu.vector_store %arg2[%c0_1, %c0_2], %0 {strides = array<i32>} : memref<1x2048xf32, #tpu.memory_space<vmem>>, vector<1x2048xf32>,
    return
  }
  func.func @transform_0(%arg0: i32) -> (i32, i32) {
    %c0_i32 = arith.constant 0 : i32
    %c0_i32_0 = arith.constant 0 : i32
    return %arg0, %c0_i32 : i32, i32
  }
  func.func @transform_1(%arg0: i32) -> (i32, i32) {
    %c0_i32 = arith.constant 0 : i32
    %c0_i32_0 = arith.constant 0 : i32
    return %arg0, %c0_i32 : i32, i32
  }
}

</mosaic_0001>

<llo_original>
// kernel: tpu_custom_call.1
$region0: #{tpu_custom_call.1}
  #allocation0 [shape = 'u32[]', space=smem, size = 0x4, offset = 0x4, fixed_abs, tag = 'smem constant byte address 0x4 - core index']
  #allocation1 [shape = 'u32[72,128]{1,0:T(1,128)}', space=vmem, size = 0x9000, scoped, tag = 'internal scratch']
  %s0 = inlined_call_operand.hbm [shape: f32[1,2048], index: 0, kind: input, shape index: {}, may-alias: {0,1}]
  %s1 = inlined_call_operand.hbm [shape: f32[1,2048], index: 1, kind: output, shape index: {}, may-alias: {0,1}]
  %s2 = sld [smem:[#allocation0]]
  $region18: #{tpu_custom_call.1} parent=0
    _
  %s4 = ssub.s32 1, %s2
  %s5 = scalar_select 0, %s4, %s2
  $region1: #{tpu_custom_call.1} parent=0
    #allocation2 [shape = 'u8[8192]{0}', space=vmem, size = 0x2000, scoped, tag = 'input window, operand 0, single buffered']
    #allocation3 [shape = 's32[1]{0}', space=sflag, size = 0x4, scoped, tag = 'scoped memory for tpu_custom_call.1']
    #allocation4 [shape = 's32[1]{0}', space=sflag, size = 0x4, scoped, tag = 'scoped memory for tpu_custom_call.1']
    #allocation5 [shape = 'u8[8192]{0}', space=vmem, size = 0x2000, scoped, tag = 'output window, operand 0, single buffered']
    %6 = vsyncpa [#allocation3], 0
    %7 = vsyncpa [#allocation4], 0
    // Predicated region
    $region2: #{tpu_custom_call.1} parent=1 // pred_check
      _
    $region3: #{tpu_custom_call.1} parent=1 // pred_check_branch
      %9 = sbr.rel (0) target = $region5
    $region4: #{tpu_custom_call.1} parent=1 // pred_region
      %11 = vsyncadd [#allocation3], 0
      %s13 = sshll.u32 %s0, 4
      %s14 = int_to_ptr.hbm [resolvable:$true] %s13
      %s15 = sshll.u32 [#allocation2], 4
      %s16 = int_to_ptr.vmem [resolvable:$true] %s15
      %18 = dma.hbm_to_vmem [thread:$0]  %s14, 256, %s16, [#allocation3]
    $region5: #{tpu_custom_call.1} parent=1 // pred_fallthru
      _
    // Predicated region
    $region6: #{tpu_custom_call.1} parent=1 // pred_check
      _
    $region7: #{tpu_custom_call.1} parent=1 // pred_check_branch
      %20 = sbr.rel (0) target = $region9
    $region8: #{tpu_custom_call.1} parent=1 // pred_region
      %22 = dma.done [#allocation3], 256
    $region9: #{tpu_custom_call.1} parent=1 // pred_fallthru
      _
    %v23 = vld [vmem:[#allocation2] sm:$0xff]
    %v24 = vld [vmem:[#allocation2 + $0x8] sm:$0xff]
    %25 = vst [vmem:[#allocation5] sm:$0xff] %v23
    %26 = vst [vmem:[#allocation5 + $0x8] sm:$0xff] %v24
    // Predicated region
    $region10: #{tpu_custom_call.1} parent=1 // pred_check
      _
    $region11: #{tpu_custom_call.1} parent=1 // pred_check_branch
      %28 = sbr.rel (0) target = $region13
    $region12: #{tpu_custom_call.1} parent=1 // pred_region
      %30 = vsyncadd [#allocation4], 0
      %s32 = sshll.u32 [#allocation5], 4
      %s33 = int_to_ptr.vmem [resolvable:$true] %s32
      %s34 = sshll.u32 %s1, 4
      %s35 = int_to_ptr.hbm [resolvable:$true] %s34
      %37 = dma.vmem_to_hbm [thread:$0]  %s33, 256, %s35, [#allocation4]
    $region13: #{tpu_custom_call.1} parent=1 // pred_fallthru
      _
    // Predicated region
    $region14: #{tpu_custom_call.1} parent=1 // pred_check
      _
    $region15: #{tpu_custom_call.1} parent=1 // pred_check_branch
      %39 = sbr.rel (0) target = $region17
    $region16: #{tpu_custom_call.1} parent=1 // pred_region
      %41 = dma.done [#allocation4], 256
    $region17: #{tpu_custom_call.1} parent=1 // pred_fallthru
      _
    %42 = vsyncpa [#allocation3], 1
    %43 = vsyncpa [#allocation4], 1

</llo_original>
